<compile_context>
chip_gen: v7x
topology: tpu7x:2x2x1
jax: 0.10.0
libtpu: 0.0.40
codegen_flags: <defaults>
</compile_context>

<pallas_src>
import math
from functools import partial

import jax
import jax.numpy as jnp
from jax.experimental import pallas as pl
from jax.experimental.pallas import tpu as pltpu


# ----------------------------- linear projection kernel -----------------------------

def _linear_kernel(x_ref, w_ref, b_ref, o_ref):
    # x: (tm, K) f32 -> cast to bf16 on the VPU, w: (K, N) bf16, b: (1, N) f32.
    x = x_ref[...].astype(w_ref.dtype)
    acc = jnp.dot(x, w_ref[...], preferred_element_type=jnp.float32)
    o_ref[...] = (acc + b_ref[...]).astype(o_ref.dtype)


def linear(x2d, w_t, b, *, out_dtype=jnp.bfloat16, tile_m=512):
    """y = x2d @ w_t + b, tiled over rows. w_t is (in, out) bf16; bias add in f32."""
    M, K = x2d.shape
    N = w_t.shape[1]
    tm = min(tile_m, M)
    Mp = ((M + tm - 1) // tm) * tm
    if Mp != M:
        x2d = jnp.pad(x2d, ((0, Mp - M), (0, 0)))
    out = pl.pallas_call(
        _linear_kernel,
        out_shape=jax.ShapeDtypeStruct((Mp, N), out_dtype),
        grid=(Mp // tm,),
        in_specs=[
            pl.BlockSpec((tm, K), lambda i: (i, 0)),
            pl.BlockSpec((K, N), lambda i: (0, 0)),    # weight: resident across row grid
            pl.BlockSpec((1, N), lambda i: (0, 0)),    # bias: resident
        ],
        out_specs=pl.BlockSpec((tm, N), lambda i: (i, 0)),
        compiler_params=pltpu.CompilerParams(
            dimension_semantics=("parallel",),
            vmem_limit_bytes=64 * 1024 * 1024),
    )(x2d, w_t, b.reshape(1, N).astype(jnp.float32))
    return out[:M] if Mp != M else out


# ----------------------------- fused relative attention kernel -----------------------------

def _skew_srel(qet):
    """Exactly reproduces the PyTorch skew (F.pad + reshape trick) on a (hb, S, S) tile.

      Srel[h, a, b] = qet[h, a, S-1+b-a]   if b <= a
                    = 0                    if b == a+1
                    = qet[h, a+1, b-a-2]   if b >  a+1

    Per-row circular right roll by (row+1): ONE strided XLU rotate per head
    (shift=0, stride=1 over the sublane axis -> row a rolled by a) followed by a static
    +1 lane roll, then one sublane roll and two masked selects.  All data stays in
    VMEM/vregs; no HBM round trip for Srel.
    """
    hb, Sq, Sk = qet.shape
    assert Sq == Sk, "fused skew requires square logits"
    row = jax.lax.broadcasted_iota(jnp.int32, (Sq, Sk), 0)
    col = jax.lax.broadcasted_iota(jnp.int32, (Sq, Sk), 1)
    rolled = [pltpu.roll(qet[h], 0, 1, stride=1, stride_axis=0) for h in range(hb)]
    x = jnp.stack(rolled, axis=0)
    x = jnp.roll(x, 1, axis=-1)                # static +1 lane roll -> total roll = row+1
    z = jnp.roll(x, -1, axis=-2)               # z[h, a, :] == x[h, a+1, :]
    zero = jnp.zeros_like(x)
    return jnp.where(col <= row, x, jnp.where(col == row + 1, zero, z))


def _attn_kernel(*refs, has_mask):
    if has_mask:
        q_ref, k_ref, v_ref, e_ref, wo_ref, bo_ref, mask_ref, o_ref = refs
    else:
        q_ref, k_ref, v_ref, e_ref, wo_ref, bo_ref, o_ref = refs
        mask_ref = None

    hb = q_ref.shape[0]

    q = q_ref[...]                              # (hb, Sq, depth) bf16, pre-scaled 1/sqrt(dk)
    k = k_ref[...]                              # (hb, Sk, depth)
    v = v_ref[...]                              # (hb, Sk, depth)
    e = e_ref[...]                              # (hb, Sk, depth)

    # MXU: bf16 inputs, f32 accumulation.
    qkt = jnp.einsum("hqd,hkd->hqk", q, k, preferred_element_type=jnp.float32)
    qet = jnp.einsum("hqd,hkd->hqk", q, e, preferred_element_type=jnp.float32)
    logits = qkt + _skew_srel(qet)              # already scaled by 1/sqrt(dk)
    if mask_ref is not None:
        logits = logits + mask_ref[...]         # mask bias pre-scaled by -1e9 on the host

    # Softmax in f32; normalize AFTER P@V (divide the (Sq,depth) context, not (Sq,Sk) probs).
    m = jnp.max(logits, axis=-1, keepdims=True)
    p = jnp.exp(logits - m)
    denom = jnp.sum(p, axis=-1, keepdims=True)                 # (hb, Sq, 1) f32
    ctx = jnp.einsum("hqk,hkd->hqd", p.astype(v.dtype), v,
                     preferred_element_type=jnp.float32)       # (hb, Sq, depth) f32
    ctx = (ctx * pl.reciprocal(denom, approx=True)).astype(wo_ref.dtype)

    # Fused output projection: accumulate ctx_h @ wo[h] into the resident f32 output block.
    wo = wo_ref[...]                                           # (hb, depth, d_model) bf16
    contrib = jnp.dot(ctx[0], wo[0], preferred_element_type=jnp.float32)
    for h in range(1, hb):
        contrib = contrib + jnp.dot(ctx[h], wo[h], preferred_element_type=jnp.float32)

    @pl.when(pl.program_id(1) == 0)
    def _():
        o_ref[...] = bo_ref[...] + contrib

    @pl.when(pl.program_id(1) > 0)
    def _():
        o_ref[...] = o_ref[...] + contrib


def attention_fused(qh, kh, vh, eh, wo_h, bo, mask_bias, *, head_block):
    """qh/kh/vh: (B,H,S,depth) bf16, eh: (H,S,depth) bf16, wo_h: (H,depth,d_model) bf16,
    bo: (1,d_model) f32, mask_bias: (Sq,Sk) f32 or None.  Returns (B,Sq,d_model) f32."""
    B, H, Sq, depth = qh.shape
    Sk = kh.shape[2]
    d_model = wo_h.shape[-1]
    hb = head_block
    assert H % hb == 0

    in_specs = [
        pl.BlockSpec((None, hb, Sq, depth), lambda b, h: (b, h, 0, 0)),
        pl.BlockSpec((None, hb, Sk, depth), lambda b, h: (b, h, 0, 0)),
        pl.BlockSpec((None, hb, Sk, depth), lambda b, h: (b, h, 0, 0)),
        pl.BlockSpec((hb, Sk, depth), lambda b, h: (h, 0, 0)),          # E block
        pl.BlockSpec((hb, depth, d_model), lambda b, h: (h, 0, 0)),     # wo block
        pl.BlockSpec((1, d_model), lambda b, h: (0, 0)),                # bo: resident
    ]
    args = [qh, kh, vh, eh, wo_h, bo]
    if mask_bias is not None:
        in_specs.append(pl.BlockSpec((Sq, Sk), lambda b, h: (0, 0)))    # mask: resident
        args.append(mask_bias)

    return pl.pallas_call(
        partial(_attn_kernel, has_mask=mask_bias is not None),
        out_shape=jax.ShapeDtypeStruct((B, Sq, d_model), jnp.float32),
        grid=(B, H // hb),
        in_specs=in_specs,
        out_specs=pl.BlockSpec((None, Sq, d_model), lambda b, h: (b, 0, 0)),
        compiler_params=pltpu.CompilerParams(
            dimension_semantics=("parallel", "arbitrary"),
            vmem_limit_bytes=64 * 1024 * 1024),
    )(*args)


# ----------------------------- JAX glue -----------------------------

def split_heads(x, num_heads):
    *lead, s, d = x.shape
    depth = d // num_heads
    x = x.reshape(*lead, s, num_heads, depth)
    return jnp.swapaxes(x, -2, -3)


def skew_jax(t):
    # Reference-only reproduction of the PyTorch skew (pad + reshape).
    R, C = t.shape[-2], t.shape[-1]
    pad_widths = [(0, 0)] * (t.ndim - 1) + [(1, 0)]
    padded = jnp.pad(t, pad_widths)
    srel = padded.reshape(-1, C + 1, R)
    srel = srel[:, 1:]
    return srel.reshape(t.shape)


def get_required_embeddings(E, seq_len, max_len):
    n_rep = max(seq_len - max_len, 0)
    start = max(max_len - seq_len, 0)
    parts = [E[0:1]] * n_rep + [E[start:max_len]]
    return jnp.concatenate(parts, axis=0)


def init_params(key, d_model, max_rel_dist):
    ks = jax.random.split(key, 9)
    bound = 1.0 / math.sqrt(d_model)

    def lin(kw, kb):
        w = jax.random.uniform(kw, (d_model, d_model), jnp.float32, -bound, bound)
        b = jax.random.uniform(kb, (d_model,), jnp.float32, -bound, bound)
        return w, b

    wq, bq = lin(ks[0], ks[1])
    wk, bk = lin(ks[2], ks[3])
    wv, bv = lin(ks[4], ks[5])
    wo, bo = lin(ks[6], ks[7])
    E = jax.random.normal(ks[8], (max_rel_dist, d_model), jnp.float32)
    return dict(wq=wq, bq=bq, wk=wk, bk=bk, wv=wv, bv=bv, wo=wo, bo=bo, E=E)


def _pick_head_block(num_heads, max_block=4):
    for cand in range(min(max_block, num_heads), 0, -1):
        if num_heads % cand == 0:
            return cand
    return num_heads


def mha_forward(params, q, k, v, num_heads, max_rel_dist, mask=None,
                compute_dtype=jnp.bfloat16, head_block=None):
    B, Sq, d_model = q.shape
    Sk = k.shape[1]
    if d_model % num_heads != 0:
        raise ValueError("d_model must be divisible into num_heads heads")
    depth = d_model // num_heads
    if Sq != Sk:
        # TODO(synk): cross-attention (Sq != Sk) needs an un-fused Srel path (skew outside).
        raise NotImplementedError("fused relative-attention kernel requires Sq == Sk")
    scale = 1.0 / math.sqrt(depth)

    # Weights pre-transposed to (in, out) and pre-cast to bf16 for the MXU; the 1/sqrt(dk)
    # scale is folded into wq/bq (exact & free: it scales both QK^T and the skewed QE^T).
    wq_t = (params["wq"] * scale).T.astype(compute_dtype)
    bq_s = (params["bq"] * scale).astype(jnp.float32)
    wk_t = params["wk"].T.astype(compute_dtype)
    wv_t = params["wv"].T.astype(compute_dtype)

    if q is k and k is v:
        # Self-attention: single fused QKV matmul -> activations read from HBM once.
        w_qkv = jnp.concatenate([wq_t, wk_t, wv_t], axis=1)       # (d_model, 3*d_model)
        b_qkv = jnp.concatenate(
            [bq_s, params["bk"].astype(jnp.float32), params["bv"].astype(jnp.float32)])
        proj = linear(q.reshape(-1, d_model), w_qkv, b_qkv, out_dtype=compute_dtype)
        qp, kp, vp = jnp.split(proj, 3, axis=-1)
    else:
        qp = linear(q.reshape(-1, d_model), wq_t, bq_s, out_dtype=compute_dtype)
        kp = linear(k.reshape(-1, d_model), wk_t, params["bk"], out_dtype=compute_dtype)
        vp = linear(v.reshape(-1, d_model), wv_t, params["bv"], out_dtype=compute_dtype)

    qp = qp.reshape(B, Sq, d_model)
    kp = kp.reshape(B, Sk, d_model)
    vp = vp.reshape(B, Sk, d_model)

    e = get_required_embeddings(params["E"], Sk, max_rel_dist).astype(compute_dtype)

    qh = split_heads(qp, num_heads)            # (B, H, Sq, depth)
    kh = split_heads(kp, num_heads)            # (B, H, Sk, depth)
    vh = split_heads(vp, num_heads)            # (B, H, Sk, depth)
    eh = split_heads(e, num_heads)             # (H, Sk, depth)

    # wo laid out per head so the output projection fuses into the attention kernel.
    wo_h = params["wo"].T.reshape(num_heads, depth, d_model).astype(compute_dtype)
    bo = params["bo"].astype(jnp.float32).reshape(1, d_model)

    if mask is not None:
        m2 = jnp.asarray(mask, jnp.float32)
        if m2.ndim > 2:
            if any(int(d) != 1 for d in m2.shape[:-2]):
                # TODO(synk): per-batch / per-head masks need a (B,H,Sq,Sk) mask BlockSpec.
                raise NotImplementedError("only masks broadcastable over batch/head supported")
            m2 = m2.reshape(m2.shape[-2], m2.shape[-1])
        mask_bias = jnp.broadcast_to(m2, (Sq, Sk)) * (-1e9)      # pre-scaled on the host
    else:
        mask_bias = None

    hb = head_block if head_block is not None else _pick_head_block(num_heads)
    out = attention_fused(qh, kh, vh, eh, wo_h, bo, mask_bias, head_block=hb)
    return out                                  # (B, Sq, d_model) f32, wo already applied


# ----------------------------- pure-JAX reference -----------------------------

def mha_reference(params, q, k, v, num_heads, max_rel_dist, mask=None,
                  compute_dtype=jnp.float32):
    """compute_dtype=f32 -> exact PyTorch-module semantics.
       compute_dtype=bf16 -> mirrors the kernel's matmul precision (tight logic check)."""
    B, Sq, d_model = q.shape
    Sk = k.shape[1]
    depth = d_model // num_heads
    scale = 1.0 / math.sqrt(depth)

    qp = ((q @ params["wq"].T + params["bq"]) * scale).astype(compute_dtype)
    kp = (k @ params["wk"].T + params["bk"]).astype(compute_dtype)
    vp = (v @ params["wv"].T + params["bv"]).astype(compute_dtype)
    e = get_required_embeddings(params["E"], Sk, max_rel_dist).astype(compute_dtype)

    qh = split_heads(qp, num_heads)
    kh = split_heads(kp, num_heads)
    vh = split_heads(vp, num_heads)
    eh = split_heads(e, num_heads)

    qkt = jnp.einsum("bhqd,bhkd->bhqk", qh, kh, preferred_element_type=jnp.float32)
    qet = jnp.einsum("bhqd,hkd->bhqk", qh, eh, preferred_element_type=jnp.float32)
    logits = qkt + skew_jax(qet)
    if mask is not None:
        logits = logits + jnp.asarray(mask, jnp.float32) * (-1e9)
    m = jnp.max(logits, axis=-1, keepdims=True)
    p = jnp.exp(logits - m)
    denom = jnp.sum(p, axis=-1, keepdims=True)
    ctx = jnp.einsum("bhqk,bhkd->bhqd", p.astype(compute_dtype), vh,
                     preferred_element_type=jnp.float32)
    ctx = ctx / denom
    attn = jnp.swapaxes(ctx, -2, -3).reshape(B, Sq, d_model).astype(compute_dtype)
    out = jnp.einsum("bsd,dm->bsm", attn, params["wo"].T.astype(compute_dtype),
                     preferred_element_type=jnp.float32)
    return out + params["bo"]


# ----------------------------- main -----------------------------

if __name__ == "__main__":
    d_model, num_heads, max_rel_dist = 128, 4, 128
    B, S = 2, 128

    key = jax.random.PRNGKey(0)
    kparam, kx, kq, kk, kv = jax.random.split(key, 5)
    params = init_params(kparam, d_model, max_rel_dist)

    look_ahead_mask = jnp.triu(jnp.ones((S, S), jnp.float32), 1)

    def check(out, q, k, v, mask):
        assert out.shape == (B, S, d_model)
        assert bool(jnp.all(jnp.isfinite(out)))
        # Tight check vs. a reference mirroring the kernel's bf16 matmul precision.
        ref_m = mha_reference(params, q, k, v, num_heads, max_rel_dist, mask=mask,
                              compute_dtype=jnp.bfloat16)
        err_m = float(jnp.max(jnp.abs(out - ref_m)))
        assert bool(jnp.allclose(out, ref_m, atol=3e-2, rtol=3e-2)), f"matched-ref err {err_m}"
        # Loose check vs. the exact f32 PyTorch-semantics reference (bf16 rounding only).
        ref_f = mha_reference(params, q, k, v, num_heads, max_rel_dist, mask=mask,
                              compute_dtype=jnp.float32)
        err_f = float(jnp.max(jnp.abs(out - ref_f)))
        assert bool(jnp.allclose(out, ref_f, atol=8e-2, rtol=8e-2)), f"f32-ref err {err_f}"

    # Self-attention (q is k is v): exercises the fused QKV projection + head-block reduction.
    x = jax.random.normal(kx, (B, S, d_model), jnp.float32)
    for mask in (None, look_ahead_mask):
        out = jax.block_until_ready(
            mha_forward(params, x, x, x, num_heads, max_rel_dist, mask=mask, head_block=2))
        check(out, x, x, x, mask)

    # Distinct q/k/v: exercises the per-tensor projection path and the default head block.
    q = jax.random.normal(kq, (B, S, d_model), jnp.float32)
    k = jax.random.normal(kk, (B, S, d_model), jnp.float32)
    v = jax.random.normal(kv, (B, S, d_model), jnp.float32)
    out = jax.block_until_ready(
        mha_forward(params, q, k, v, num_heads, max_rel_dist, mask=look_ahead_mask))
    check(out, q, k, v, look_ahead_mask)

    print("KERNEL_OK")
</pallas_src>

<mosaic_0001>
module attributes {stable_mosaic.version = 11 : i64} {
  func.func @_linear_kernel(%arg0: i32, %arg1: memref<256x128xf32, #tpu.memory_space<vmem>>, %arg2: memref<128x384xbf16, #tpu.memory_space<vmem>>, %arg3: memref<1x384xf32, #tpu.memory_space<vmem>>, %arg4: memref<256x384xbf16, #tpu.memory_space<vmem>>) attributes {dimension_semantics = [#tpu.dimension_semantics<parallel>], iteration_bounds = array<i64: 1>, scalar_prefetch = 0 : i64, scratch_operands = 0 : i64, tpu.core_type = #tpu.core_type<tc>, window_params = [{transform_indices = @transform_0, window_bounds = array<i64: 256, 128>}, {pipeline_mode = #tpu.pipeline_mode<synchronous>, transform_indices = @transform_1, window_bounds = array<i64: 128, 384>}, {pipeline_mode = #tpu.pipeline_mode<synchronous>, transform_indices = @transform_2, window_bounds = array<i64: 1, 384>}, {transform_indices = @transform_3, window_bounds = array<i64: 256, 384>}]} {
    %c0 = arith.constant 0 : index
    %c0_0 = arith.constant 0 : index
    %0 = vector.load %arg1[%c0, %c0_0] : memref<256x128xf32, #tpu.memory_space<vmem>>, vector<256x128xf32>
    %1 = arith.truncf %0 : vector<256x128xf32> to vector<256x128xbf16>
    %c0_1 = arith.constant 0 : index
    %c0_2 = arith.constant 0 : index
    %2 = vector.load %arg2[%c0_1, %c0_2] : memref<128x384xbf16, #tpu.memory_space<vmem>>, vector<128x384xbf16>
    %cst = arith.constant dense<0.000000e+00> : vector<256x384xf32>
    %3 = tpu.matmul %1, %2, %cst {dimension_numbers = #tpu.dot_dimension_numbers<[1], [0], [0], [1], [0, 0, 1, 1], [], []>} : vector<256x128xbf16>, vector<128x384xbf16>, vector<256x384xf32> -> vector<256x384xf32>
    %c0_3 = arith.constant 0 : index
    %c0_4 = arith.constant 0 : index
    %4 = vector.load %arg3[%c0_3, %c0_4] : memref<1x384xf32, #tpu.memory_space<vmem>>, vector<1x384xf32>
    %5 = vector.broadcast %4 : vector<1x384xf32> to vector<256x384xf32>
    %6 = arith.addf %3, %5 : vector<256x384xf32>
    %7 = arith.truncf %6 : vector<256x384xf32> to vector<256x384xbf16>
    %c0_5 = arith.constant 0 : index
    %c0_6 = arith.constant 0 : index
    %8 = vector.load %arg4[%c0_5, %c0_6] : memref<256x384xbf16, #tpu.memory_space<vmem>>, vector<256x384xbf16>
    tpu.vector_store %arg4[%c0_5, %c0_6], %7 {strides = array<i32>} : memref<256x384xbf16, #tpu.memory_space<vmem>>, vector<256x384xbf16>,
    return
  }
  func.func @transform_0(%arg0: i32) -> (i32, i32) {
    %c0_i32 = arith.constant 0 : i32
    %c0_i32_0 = arith.constant 0 : i32
    return %arg0, %c0_i32 : i32, i32
  }
  func.func @transform_1(%arg0: i32) -> (i32, i32) {
    %c0_i32 = arith.constant 0 : i32
    %c0_i32_0 = arith.constant 0 : i32
    %c0_i32_1 = arith.constant 0 : i32
    return %c0_i32, %c0_i32_0 : i32, i32
  }
  func.func @transform_2(%arg0: i32) -> (i32, i32) {
    %c0_i32 = arith.constant 0 : i32
    %c0_i32_0 = arith.constant 0 : i32
    %c0_i32_1 = arith.constant 0 : i32
    return %c0_i32, %c0_i32_0 : i32, i32
  }
  func.func @transform_3(%arg0: i32) -> (i32, i32) {
    %c0_i32 = arith.constant 0 : i32
    %c0_i32_0 = arith.constant 0 : i32
    return %arg0, %c0_i32 : i32, i32
  }
}

</mosaic_0001>

<llo_original>
// kernel: tpu_custom_call.1
$region0: #{tpu_custom_call.1}
  #allocation0 [shape = 'u32[]', space=smem, size = 0x4, offset = 0x4, fixed_abs, tag = 'smem constant byte address 0x4 - core index']
  #allocation1 [shape = 'u32[144,128]{1,0:T(1,128)}', space=vmem, size = 0x12000, scoped, tag = 'internal scratch']
  %s0 = inlined_call_operand.hbm [shape: f32[256,128], index: 0, kind: input, shape index: {}]
  %s1 = inlined_call_operand.hbm [shape: bf16[128,384], index: 1, kind: input, shape index: {}]
  %s2 = inlined_call_operand.hbm [shape: f32[1,384], index: 2, kind: input, shape index: {}]
  %s3 = inlined_call_operand.hbm [shape: bf16[256,384], index: 3, kind: output, shape index: {}]
  %s4 = sld [smem:[#allocation0]]
  $region34: #{tpu_custom_call.1} parent=0
    _
  %s6 = ssub.s32 1, %s4
  %s7 = scalar_select 0, %s6, %s4
  $region1: #{tpu_custom_call.1} parent=0
    #allocation2 [shape = 'u8[131072]{0}', space=vmem, size = 0x20000, scoped, tag = 'input window, operand 0, single buffered']
    #allocation3 [shape = 's32[1]{0}', space=sflag, size = 0x4, scoped, tag = 'scoped memory for tpu_custom_call.1']
    #allocation4 [shape = 's32[1]{0}', space=sflag, size = 0x4, scoped, tag = 'scoped memory for tpu_custom_call.1']
    #allocation5 [shape = 'u8[98304]{0}', space=vmem, size = 0x18000, scoped, tag = 'input window, operand 1, single buffered']
    #allocation6 [shape = 's32[1]{0}', space=sflag, size = 0x4, scoped, tag = 'scoped memory for tpu_custom_call.1']
    #allocation7 [shape = 'u8[1536]{0}', space=vmem, size = 0x800, scoped, tag = 'input window, operand 2, single buffered']
    #allocation8 [shape = 'u8[196608]{0}', space=vmem, size = 0x30000, scoped, tag = 'output window, operand 0, single buffered']
    %8 = vsyncpa [#allocation3], 0
    %9 = vsyncpa [#allocation6], 0
    %10 = vsyncpa [#allocation4], 0
    // Predicated region
    $region2: #{tpu_custom_call.1} parent=1 // pred_check
      _
    $region3: #{tpu_custom_call.1} parent=1 // pred_check_branch
      %12 = sbr.rel (0) target = $region5
    $region4: #{tpu_custom_call.1} parent=1 // pred_region
      %s14 = ssub.s32 4096, 4096
      %15 = vsyncadd [#allocation3], %s14
      %s16 = sshll.u32 [#allocation2], 4
      %s17 = int_to_ptr.vmem [resolvable:$true] %s16
      %22 = dma.hbm_to_vmem [thread:$0]  %s0, 4096, %s17, [#allocation3], 128, 128, 8
    $region5: #{tpu_custom_call.1} parent=1 // pred_fallthru
      _
    // Predicated region
    $region6: #{tpu_custom_call.1} parent=1 // pred_check
      _
    $region7: #{tpu_custom_call.1} parent=1 // pred_check_branch
      %24 = sbr.rel (0) target = $region9
    $region8: #{tpu_custom_call.1} parent=1 // pred_region
      %s26 = ssub.s32 3072, 3072
      %27 = vsyncadd [#allocation6], %s26
      %s28 = sshll.u32 [#allocation5], 4
      %s29 = int_to_ptr.vmem [resolvable:$true] %s28
      %34 = dma.hbm_to_vmem [thread:$0]  %s1, 3072, %s29, [#allocation6], 192, 192, 12
    $region9: #{tpu_custom_call.1} parent=1 // pred_fallthru
      _
    // Predicated region
    $region10: #{tpu_custom_call.1} parent=1 // pred_check
      _
    $region11: #{tpu_custom_call.1} parent=1 // pred_check_branch
      %36 = sbr.rel (0) target = $region13
    $region12: #{tpu_custom_call.1} parent=1 // pred_region
      %s38 = ssub.s32 48, 48
      %39 = vsyncadd [#allocation6], %s38
      %s41 = sshll.u32 [#allocation7], 4
      %s42 = int_to_ptr.vmem [resolvable:$true] %s41
      %44 = dma.hbm_to_vmem [thread:$0]  %s2, 48, %s42, [#allocation6]
    $region13: #{tpu_custom_call.1} parent=1 // pred_fallthru
      _
    // Predicated region
    $region14: #{tpu_custom_call.1} parent=1 // pred_check
      _
    $region15: #{tpu_custom_call.1} parent=1 // pred_check_branch
      %46 = sbr.rel (0) target = $region17
    $region16: #{tpu_custom_call.1} parent=1 // pred_region
      %47 = dma.done [#allocation3], 4096
    $region17: #{tpu_custom_call.1} parent=1 // pred_fallthru
      _
    // Predicated region
    $region18: #{tpu_custom_call.1} parent=1 // pred_check
      _
    $region19: #{tpu_custom_call.1} parent=1 // pred_check_branch
      %49 = sbr.rel (0) target = $region21
    $region20: #{tpu_custom_call.1} parent=1 // pred_region
      %50 = dma.done [#allocation6], 3072
    $region21: #{tpu_custom_call.1} parent=1 // pred_fallthru
      _
    // Predicated region
    $region22: #{tpu_custom_call.1} parent=1 // pred_check
      _
    $region23: #{tpu_custom_call.1} parent=1 // pred_check_branch
      %52 = sbr.rel (0) target = $region25
    $region24: #{tpu_custom_call.1} parent=1 // pred_region
      %53 = dma.done [#allocation6], 48
    $region25: #{tpu_custom_call.1} parent=1 // pred_fallthru
      _
    %v55 = vld [vmem:[#allocation2] sm:$0xff]
    %v56 = vld [vmem:[#allocation2 + $0x8] sm:$0xff]
    %v57 = vld [vmem:[#allocation2 + $0x10] sm:$0xff]
    %v58 = vld [vmem:[#allocation2 + $0x18] sm:$0xff]
    %v59 = vld [vmem:[#allocation2 + $0x20] sm:$0xff]
    %v60 = vld [vmem:[#allocation2 + $0x28] sm:$0xff]
    %v61 = vld [vmem:[#allocation2 + $0x30] sm:$0xff]
    %v62 = vld [vmem:[#allocation2 + $0x38] sm:$0xff]
    %v63 = vld [vmem:[#allocation2 + $0x40] sm:$0xff]
    %v64 = vld [vmem:[#allocation2 + $0x48] sm:$0xff]
    %v65 = vld [vmem:[#allocation2 + $0x50] sm:$0xff]
    %v66 = vld [vmem:[#allocation2 + $0x58] sm:$0xff]
    %v67 = vld [vmem:[#allocation2 + $0x60] sm:$0xff]
    %v68 = vld [vmem:[#allocation2 + $0x68] sm:$0xff]
    %v69 = vld [vmem:[#allocation2 + $0x70] sm:$0xff]
    %v70 = vld [vmem:[#allocation2 + $0x78] sm:$0xff]
    %v71 = vld [vmem:[#allocation2 + $0x80] sm:$0xff]
    %v72 = vld [vmem:[#allocation2 + $0x88] sm:$0xff]
    %v73 = vld [vmem:[#allocation2 + $0x90] sm:$0xff]
    %v74 = vld [vmem:[#allocation2 + $0x98] sm:$0xff]
    %v75 = vld [vmem:[#allocation2 + $0xa0] sm:$0xff]
    %v76 = vld [vmem:[#allocation2 + $0xa8] sm:$0xff]
    %v77 = vld [vmem:[#allocation2 + $0xb0] sm:$0xff]
    %v78 = vld [vmem:[#allocation2 + $0xb8] sm:$0xff]
    %v79 = vld [vmem:[#allocation2 + $0xc0] sm:$0xff]
    %v80 = vld [vmem:[#allocation2 + $0xc8] sm:$0xff]
    %v81 = vld [vmem:[#allocation2 + $0xd0] sm:$0xff]
    %v82 = vld [vmem:[#allocation2 + $0xd8] sm:$0xff]
    %v83 = vld [vmem:[#allocation2 + $0xe0] sm:$0xff]
    %v84 = vld [vmem:[#allocation2 + $0xe8] sm:$0xff]
    %v85 = vld [vmem:[#allocation2 + $0xf0] sm:$0xff]
    %v86 = vld [vmem:[#allocation2 + $0xf8] sm:$0xff]
    %v87 = vpack.c.bf16 %v56, %v55
    %v88 = vpack.c.bf16 %v58, %v57
    %v89 = vpack.c.bf16 %v60, %v59
    %v90 = vpack.c.bf16 %v62, %v61
    %v91 = vpack.c.bf16 %v64, %v63
    %v92 = vpack.c.bf16 %v66, %v65
    %v93 = vpack.c.bf16 %v68, %v67
    %v94 = vpack.c.bf16 %v70, %v69
    %v95 = vpack.c.bf16 %v72, %v71
    %v96 = vpack.c.bf16 %v74, %v73
    %v97 = vpack.c.bf16 %v76, %v75
    %v98 = vpack.c.bf16 %v78, %v77
    %v99 = vpack.c.bf16 %v80, %v79
    %v100 = vpack.c.bf16 %v82, %v81
    %v101 = vpack.c.bf16 %v84, %v83
    %v102 = vpack.c.bf16 %v86, %v85
    %v103 = vld [vmem:[#allocation5] sm:$0xff]
    %v104 = vld [vmem:[#allocation5 + $0x8] sm:$0xf]
    %v105 = vld [vmem:[#allocation5 + $0xc] sm:$0xff]
    %v106 = vld [vmem:[#allocation5 + $0x14] sm:$0xf]
    %v107 = vld [vmem:[#allocation5 + $0x18] sm:$0xff]
    %v108 = vld [vmem:[#allocation5 + $0x20] sm:$0xf]
    %v109 = vld [vmem:[#allocation5 + $0x24] sm:$0xff]
    %v110 = vld [vmem:[#allocation5 + $0x2c] sm:$0xf]
    %v111 = vld [vmem:[#allocation5 + $0x30] sm:$0xff]
    %v112 = vld [vmem:[#allocation5 + $0x38] sm:$0xf]
    %v113 = vld [vmem:[#allocation5 + $0x3c] sm:$0xff]
    %v114 = vld [vmem:[#allocation5 + $0x44] sm:$0xf]
    %v115 = vld [vmem:[#allocation5 + $0x48] sm:$0xff]
    %v116 = vld [vmem:[#allocation5 + $0x50] sm:$0xf]
    %v117 = vld [vmem:[#allocation5 + $0x54] sm:$0xff]
    %v118 = vld [vmem:[#allocation5 + $0x5c] sm:$0xf]
    %v119 = vld [vmem:[#allocation5 + $0x60] sm:$0xff]
    %v120 = vld [vmem:[#allocation5 + $0x68] sm:$0xf]
    %v121 = vld [vmem:[#allocation5 + $0x6c] sm:$0xff]
    %v122 = vld [vmem:[#allocation5 + $0x74] sm:$0xf]
    %v123 = vld [vmem:[#allocation5 + $0x78] sm:$0xff]
    %v124 = vld [vmem:[#allocation5 + $0x80] sm:$0xf]
    %v125 = vld [vmem:[#allocation5 + $0x84] sm:$0xff]
    %v126 = vld [vmem:[#allocation5 + $0x8c] sm:$0xf]
    %v127 = vld [vmem:[#allocation5 + $0x90] sm:$0xff]
    %v128 = vld [vmem:[#allocation5 + $0x98] sm:$0xf]
    %v129 = vld [vmem:[#allocation5 + $0x9c] sm:$0xff]
    %v130 = vld [vmem:[#allocation5 + $0xa4] sm:$0xf]
    %v131 = vld [vmem:[#allocation5 + $0xa8] sm:$0xff]
    %v132 = vld [vmem:[#allocation5 + $0xb0] sm:$0xf]
    %v133 = vld [vmem:[#allocation5 + $0xb4] sm:$0xff]
    %v134 = vld [vmem:[#allocation5 + $0xbc] sm:$0xf]
    %v135 = vld [vmem:[#allocation7] sm:$0x7]
    %v137 = vlaneseq
    %v138 = vshrl.u32 %v137, 7
    %v139 = vsub.s32 0, %v138
    %v140 = vrot.slane %v135, %v139
    %v141 = vlaneseq
    %v142 = vshrl.u32 %v141, 7
    %v143 = vsub.s32 1, %v142
    %v144 = vrot.slane %v135, %v143
    %v145 = vlaneseq
    %v146 = vshrl.u32 %v145, 7
    %v147 = vsub.s32 2, %v146
    %v148 = vrot.slane %v135, %v147
    %v184 = vunpack.c.l.b16 %v103
    %v185 = vunpack.c.h.b16 %v103
    %v186 = vunpack.c.l.b16 %v104
    %v187 = vunpack.c.l.b16 %v105
    %v188 = vunpack.c.h.b16 %v105
    %v189 = vunpack.c.l.b16 %v106
    %v190 = vunpack.c.l.b16 %v107
    %v191 = vunpack.c.h.b16 %v107
    %v192 = vunpack.c.l.b16 %v108
    %v193 = vunpack.c.l.b16 %v109
    %v194 = vunpack.c.h.b16 %v109
    %v195 = vunpack.c.l.b16 %v110
    %v196 = vunpack.c.l.b16 %v111
    %v197 = vunpack.c.h.b16 %v111
    %v198 = vunpack.c.l.b16 %v112
    %v199 = vunpack.c.l.b16 %v113
    %v200 = vunpack.c.h.b16 %v113
    %v201 = vunpack.c.l.b16 %v114
    %v202 = vunpack.c.l.b16 %v115
    %v203 = vunpack.c.h.b16 %v115
    %v204 = vunpack.c.l.b16 %v116
    %v205 = vunpack.c.l.b16 %v117
    %v206 = vunpack.c.h.b16 %v117
    %v207 = vunpack.c.l.b16 %v118
    %v208 = vunpack.c.l.b16 %v119
    %v209 = vunpack.c.h.b16 %v119
    %v210 = vunpack.c.l.b16 %v120
    %v211 = vunpack.c.l.b16 %v121
    %v212 = vunpack.c.h.b16 %v121
    %v213 = vunpack.c.l.b16 %v122
    %v214 = vunpack.c.l.b16 %v123
    %v215 = vunpack.c.h.b16 %v123
    %v216 = vunpack.c.l.b16 %v124
    %v217 = vunpack.c.l.b16 %v125
    %v218 = vunpack.c.h.b16 %v125
    %v219 = vunpack.c.l.b16 %v126
    %v220 = vunpack.c.l.b16 %v127
    %v221 = vunpack.c.h.b16 %v127
    %v222 = vunpack.c.l.b16 %v128
    %v223 = vunpack.c.l.b16 %v129
    %v224 = vunpack.c.h.b16 %v129
    %v225 = vunpack.c.l.b16 %v130
    %v226 = vunpack.c.l.b16 %v131
    %v227 = vunpack.c.h.b16 %v131
    %v228 = vunpack.c.l.b16 %v132
    %v229 = vunpack.c.l.b16 %v133
    %v230 = vunpack.c.h.b16 %v133
    %v231 = vunpack.c.l.b16 %v134
    %v232 = vpack.c.b16 %v187, %v184
    %v233 = vpack.c.b16 %v188, %v185
    %v234 = vpack.c.b16 %v189, %v186
    %v235 = vpack.c.b16 %v193, %v190
    %v236 = vpack.c.b16 %v194, %v191
    %v237 = vpack.c.b16 %v195, %v192
    %v238 = vpack.c.b16 %v199, %v196
    %v239 = vpack.c.b16 %v200, %v197
    %v240 = vpack.c.b16 %v201, %v198
    %v241 = vpack.c.b16 %v205, %v202
    %v242 = vpack.c.b16 %v206, %v203
    %v243 = vpack.c.b16 %v207, %v204
    %v244 = vpack.c.b16 %v211, %v208
    %v245 = vpack.c.b16 %v212, %v209
    %v246 = vpack.c.b16 %v213, %v210
    %v247 = vpack.c.b16 %v217, %v214
    %v248 = vpack.c.b16 %v218, %v215
    %v249 = vpack.c.b16 %v219, %v216
    %v250 = vpack.c.b16 %v223, %v220
    %v251 = vpack.c.b16 %v224, %v221
    %v252 = vpack.c.b16 %v225, %v222
    %v253 = vpack.c.b16 %v229, %v226
    %v254 = vpack.c.b16 %v230, %v227
    %v255 = vpack.c.b16 %v231, %v228
    %280 = vmatprep.subr.bf16.mxu0 %v233
    %281 = vmatpush1.bf16.msra.mxu0 %v232
    %282 = vmatprep.subr.bf16.mxu0 %v236
    %283 = vmatpush1.bf16.msra.mxu0 %v235
    %284 = vmatprep.subr.bf16.mxu0 %v239
    %285 = vmatpush1.bf16.msra.mxu0 %v238
    %286 = vmatprep.subr.bf16.mxu0 %v242
    %287 = vmatpush1.bf16.msra.mxu0 %v241
    %288 = vmatprep.subr.bf16.mxu0 %v245
    %289 = vmatpush1.bf16.msra.mxu0 %v244
    %290 = vmatprep.subr.bf16.mxu0 %v248
    %291 = vmatpush1.bf16.msra.mxu0 %v247
    %292 = vmatprep.subr.bf16.mxu0 %v251
    %293 = vmatpush1.bf16.msra.mxu0 %v250
    %294 = vmatprep.subr.bf16.mxu0 %v254
    %295 = vmatpush1.bf16.msra.mxu0 %v253
    %296 = vmatprep.subr.bf16.mxu0 0
    %297 = vmatpush1.bf16.msra.mxu0 0
    %298 = vmatprep.subr.bf16.mxu0 0
    %299 = vmatpush1.bf16.msra.mxu0 0
    %300 = vmatprep.subr.bf16.mxu0 0
    %301 = vmatpush1.bf16.msra.mxu0 0
    %302 = vmatprep.subr.bf16.mxu0 0
    %303 = vmatpush1.bf16.msra.mxu0 0
    %304 = vmatprep.subr.bf16.mxu0 0
    %305 = vmatpush1.bf16.msra.mxu0 0
    %306 = vmatprep.subr.bf16.mxu0 0
    %307 = vmatpush1.bf16.msra.mxu0 0
    %308 = vmatprep.subr.bf16.mxu0 0
    %309 = vmatpush1.bf16.msra.mxu0 0
    %310 = vmatprep.subr.bf16.mxu0 0
    %311 = vmatpush1.bf16.msra.mxu0 0
    %312 = vmatprep.mubr.bf16.mxu0 0
    %313 = vmatmul.mubr.bf16.gmra.mrb[0].mxu0 %v87
    %v314 = vpop.f32.mrb[0].mxu0
    %v315 = vadd.f32 %v140, %v314
    %v316 = vpop.f32.mrb[0].mxu0
    %v317 = vadd.f32 %v144, %v316
    %v318 = vpop.f32.mrb[0].mxu0
    %v319 = vadd.f32 %v140, %v318
    %v320 = vpop.f32.mrb[0].mxu0
    %v321 = vadd.f32 %v144, %v320
    %322 = vmatprep.mubr.bf16.mxu0 0
    %323 = vmatmul.mubr.bf16.gmra.mrb[0].mxu0 %v88
    %v324 = vpop.f32.mrb[0].mxu0
    %v325 = vadd.f32 %v140, %v324
    %v326 = vpop.f32.mrb[0].mxu0
    %v327 = vadd.f32 %v144, %v326
    %v328 = vpop.f32.mrb[0].mxu0
    %v329 = vadd.f32 %v140, %v328
    %v330 = vpop.f32.mrb[0].mxu0
    %v331 = vadd.f32 %v144, %v330
    %332 = vmatprep.mubr.bf16.mxu0 0
    %333 = vmatmul.mubr.bf16.gmra.mrb[0].mxu0 %v89
    %v334 = vpop.f32.mrb[0].mxu0
    %v335 = vadd.f32 %v140, %v334
    %v336 = vpop.f32.mrb[0].mxu0
    %v337 = vadd.f32 %v144, %v336
    %v338 = vpop.f32.mrb[0].mxu0
    %v339 = vadd.f32 %v140, %v338
    %v340 = vpop.f32.mrb[0].mxu0
    %v341 = vadd.f32 %v144, %v340
    %342 = vmatprep.mubr.bf16.mxu0 0
    %343 = vmatmul.mubr.bf16.gmra.mrb[0].mxu0 %v90
    %v344 = vpop.f32.mrb[0].mxu0
    %v345 = vadd.f32 %v140, %v344
    %v346 = vpop.f32.mrb[0].mxu0
    %v347 = vadd.f32 %v144, %v346
    %v348 = vpop.f32.mrb[0].mxu0
    %v349 = vadd.f32 %v140, %v348
    %v350 = vpop.f32.mrb[0].mxu0
    %v351 = vadd.f32 %v144, %v350
    %352 = vmatprep.mubr.bf16.mxu0 0
    %353 = vmatmul.mubr.bf16.gmra.mrb[0].mxu0 %v91
    %v354 = vpop.f32.mrb[0].mxu0
    %v355 = vadd.f32 %v140, %v354
    %v356 = vpop.f32.mrb[0].mxu0
    %v357 = vadd.f32 %v144, %v356
    %v358 = vpop.f32.mrb[0].mxu0
    %v359 = vadd.f32 %v140, %v358
    %v360 = vpop.f32.mrb[0].mxu0
    %v361 = vadd.f32 %v144, %v360
    %362 = vmatprep.mubr.bf16.mxu0 0
    %363 = vmatmul.mubr.bf16.gmra.mrb[0].mxu0 %v92
    %v364 = vpop.f32.mrb[0].mxu0
    %v365 = vadd.f32 %v140, %v364
    %v366 = vpop.f32.mrb[0].mxu0
    %v367 = vadd.f32 %v144, %v366
    %v368 = vpop.f32.mrb[0].mxu0
    %v369 = vadd.f32 %v140, %v368
    %v370 = vpop.f32.mrb[0].mxu0
    %v371 = vadd.f32 %v144, %v370
    %372 = vmatprep.mubr.bf16.mxu0 0
    %373 = vmatmul.mubr.bf16.gmra.mrb[0].mxu0 %v93
    %v374 = vpop.f32.mrb[0].mxu0
    %v375 = vadd.f32 %v140, %v374
    %v376 = vpop.f32.mrb[0].mxu0
    %v377 = vadd.f32 %v144, %v376
    %v378 = vpop.f32.mrb[0].mxu0
    %v379 = vadd.f32 %v140, %v378
    %v380 = vpop.f32.mrb[0].mxu0
    %v381 = vadd.f32 %v144, %v380
    %382 = vmatprep.mubr.bf16.mxu0 0
    %383 = vmatmul.mubr.bf16.gmra.mrb[0].mxu0 %v94
    %v384 = vpop.f32.mrb[0].mxu0
    %v385 = vadd.f32 %v140, %v384
    %v386 = vpop.f32.mrb[0].mxu0
    %v387 = vadd.f32 %v144, %v386
    %v388 = vpop.f32.mrb[0].mxu0
    %v389 = vadd.f32 %v140, %v388
    %v390 = vpop.f32.mrb[0].mxu0
    %v391 = vadd.f32 %v144, %v390
    %392 = vmatprep.mubr.bf16.mxu0 0
    %393 = vmatmul.mubr.bf16.gmra.mrb[0].mxu0 %v95
    %v394 = vpop.f32.mrb[0].mxu0
    %v395 = vadd.f32 %v140, %v394
    %v396 = vpop.f32.mrb[0].mxu0
    %v397 = vadd.f32 %v144, %v396
    %v398 = vpop.f32.mrb[0].mxu0
    %v399 = vadd.f32 %v140, %v398
    %v400 = vpop.f32.mrb[0].mxu0
    %v401 = vadd.f32 %v144, %v400
    %402 = vmatprep.mubr.bf16.mxu0 0
    %403 = vmatmul.mubr.bf16.gmra.mrb[0].mxu0 %v96
    %v404 = vpop.f32.mrb[0].mxu0
    %v405 = vadd.f32 %v140, %v404
    %v406 = vpop.f32.mrb[0].mxu0
    %v407 = vadd.f32 %v144, %v406
    %v408 = vpop.f32.mrb[0].mxu0
    %v409 = vadd.f32 %v140, %v408
    %v410 = vpop.f32.mrb[0].mxu0
    %v411 = vadd.f32 %v144, %v410
    %412 = vmatprep.mubr.bf16.mxu0 0
    %413 = vmatmul.mubr.bf16.gmra.mrb[0].mxu0 %v97
    %v414 = vpop.f32.mrb[0].mxu0
    %v415 = vadd.f32 %v140, %v414
    %v416 = vpop.f32.mrb[0].mxu0
    %v417 = vadd.f32 %v144, %v416
    %v418 = vpop.f32.mrb[0].mxu0
    %v419 = vadd.f32 %v140, %v418
    %v420 = vpop.f32.mrb[0].mxu0
    %v421 = vadd.f32 %v144, %v420
    %422 = vmatprep.mubr.bf16.mxu0 0
    %423 = vmatmul.mubr.bf16.gmra.mrb[0].mxu0 %v98
    %v424 = vpop.f32.mrb[0].mxu0
    %v425 = vadd.f32 %v140, %v424
    %v426 = vpop.f32.mrb[0].mxu0
    %v427 = vadd.f32 %v144, %v426
    %v428 = vpop.f32.mrb[0].mxu0
    %v429 = vadd.f32 %v140, %v428
    %v430 = vpop.f32.mrb[0].mxu0
    %v431 = vadd.f32 %v144, %v430
    %432 = vmatprep.mubr.bf16.mxu0 0
    %433 = vmatmul.mubr.bf16.gmra.mrb[0].mxu0 %v99
    %v434 = vpop.f32.mrb[0].mxu0
    %v435 = vadd.f32 %v140, %v434
    %v436 = vpop.f32.mrb[0].mxu0
    %v437 = vadd.f32 %v144, %v436
    %v438 = vpop.f32.mrb[0].mxu0
    %v439 = vadd.f32 %v140, %v438
    %v440 = vpop.f32.mrb[0].mxu0
    %v441 = vadd.f32 %v144, %v440
    %442 = vmatprep.mubr.bf16.mxu0 0
    %443 = vmatmul.mubr.bf16.gmra.mrb[0].mxu0 %v100
    %v444 = vpop.f32.mrb[0].mxu0
    %v445 = vadd.f32 %v140, %v444
    %v446 = vpop.f32.mrb[0].mxu0
    %v447 = vadd.f32 %v144, %v446
    %v448 = vpop.f32.mrb[0].mxu0
    %v449 = vadd.f32 %v140, %v448
    %v450 = vpop.f32.mrb[0].mxu0
    %v451 = vadd.f32 %v144, %v450
    %452 = vmatprep.mubr.bf16.mxu0 0
    %453 = vmatmul.mubr.bf16.gmra.mrb[0].mxu0 %v101
    %v454 = vpop.f32.mrb[0].mxu0
    %v455 = vadd.f32 %v140, %v454
    %v456 = vpop.f32.mrb[0].mxu0
    %v457 = vadd.f32 %v144, %v456
    %v458 = vpop.f32.mrb[0].mxu0
    %v459 = vadd.f32 %v140, %v458
    %v460 = vpop.f32.mrb[0].mxu0
    %v461 = vadd.f32 %v144, %v460
    %462 = vmatprep.mubr.bf16.mxu0 0
    %463 = vmatmul.mubr.bf16.gmra.mrb[0].mxu0 %v102
    %v464 = vpop.f32.mrb[0].mxu0
    %v465 = vadd.f32 %v140, %v464
    %v466 = vpop.f32.mrb[0].mxu0
    %v467 = vadd.f32 %v144, %v466
    %v468 = vpop.f32.mrb[0].mxu0
    %v469 = vadd.f32 %v140, %v468
    %v470 = vpop.f32.mrb[0].mxu0
    %v471 = vadd.f32 %v144, %v470
    %472 = vdwg.mxu0
    %473 = vmatprep.subr.bf16.mxu0 0
    %474 = vmatpush1.bf16.msra.mxu0 %v234
    %475 = vmatprep.subr.bf16.mxu0 0
    %476 = vmatpush1.bf16.msra.mxu0 %v237
    %477 = vmatprep.subr.bf16.mxu0 0
    %478 = vmatpush1.bf16.msra.mxu0 %v240
    %479 = vmatprep.subr.bf16.mxu0 0
    %480 = vmatpush1.bf16.msra.mxu0 %v243
    %481 = vmatprep.subr.bf16.mxu0 0
    %482 = vmatpush1.bf16.msra.mxu0 %v246
    %483 = vmatprep.subr.bf16.mxu0 0
    %484 = vmatpush1.bf16.msra.mxu0 %v249
    %485 = vmatprep.subr.bf16.mxu0 0
    %486 = vmatpush1.bf16.msra.mxu0 %v252
    %487 = vmatprep.subr.bf16.mxu0 0
    %488 = vmatpush1.bf16.msra.mxu0 %v255
    %489 = vmatprep.subr.bf16.mxu0 0
    %490 = vmatpush1.bf16.msra.mxu0 0
    %491 = vmatprep.subr.bf16.mxu0 0
    %492 = vmatpush1.bf16.msra.mxu0 0
    %493 = vmatprep.subr.bf16.mxu0 0
    %494 = vmatpush1.bf16.msra.mxu0 0
    %495 = vmatprep.subr.bf16.mxu0 0
    %496 = vmatpush1.bf16.msra.mxu0 0
    %497 = vmatprep.subr.bf16.mxu0 0
    %498 = vmatpush1.bf16.msra.mxu0 0
    %499 = vmatprep.subr.bf16.mxu0 0
    %500 = vmatpush1.bf16.msra.mxu0 0
    %501 = vmatprep.subr.bf16.mxu0 0
    %502 = vmatpush1.bf16.msra.mxu0 0
    %503 = vmatprep.subr.bf16.mxu0 0
    %504 = vmatpush1.bf16.msra.mxu0 0
    %505 = vmatprep.mubr.bf16.mxu0 0
    %506 = vmatmul.mubr.bf16.gmra.mrb[0].mxu0 %v87
    %v507 = vpop.f32.mrb[0].mxu0
    %v508 = vadd.f32 %v148, %v507
    %v509 = vpop.f32.mrb[0].mxu0
    %v510 = vpop.f32.mrb[0].mxu0
    %v511 = vadd.f32 %v148, %v510
    %v512 = vpop.f32.mrb[0].mxu0
    %513 = vmatprep.mubr.bf16.mxu0 0
    %514 = vmatmul.mubr.bf16.gmra.mrb[0].mxu0 %v88
    %v515 = vpop.f32.mrb[0].mxu0
    %v516 = vadd.f32 %v148, %v515
    %v517 = vpop.f32.mrb[0].mxu0
    %v518 = vpop.f32.mrb[0].mxu0
    %v519 = vadd.f32 %v148, %v518
    %v520 = vpop.f32.mrb[0].mxu0
    %521 = vmatprep.mubr.bf16.mxu0 0
    %522 = vmatmul.mubr.bf16.gmra.mrb[0].mxu0 %v89
    %v523 = vpop.f32.mrb[0].mxu0
    %v524 = vadd.f32 %v148, %v523
    %v525 = vpop.f32.mrb[0].mxu0
    %v526 = vpop.f32.mrb[0].mxu0
    %v527 = vadd.f32 %v148, %v526
    %v528 = vpop.f32.mrb[0].mxu0
    %529 = vmatprep.mubr.bf16.mxu0 0
    %530 = vmatmul.mubr.bf16.gmra.mrb[0].mxu0 %v90
    %v531 = vpop.f32.mrb[0].mxu0
    %v532 = vadd.f32 %v148, %v531
    %v533 = vpop.f32.mrb[0].mxu0
    %v534 = vpop.f32.mrb[0].mxu0
    %v535 = vadd.f32 %v148, %v534
    %v536 = vpop.f32.mrb[0].mxu0
    %537 = vmatprep.mubr.bf16.mxu0 0
    %538 = vmatmul.mubr.bf16.gmra.mrb[0].mxu0 %v91
    %v539 = vpop.f32.mrb[0].mxu0
    %v540 = vadd.f32 %v148, %v539
    %v541 = vpop.f32.mrb[0].mxu0
    %v542 = vpop.f32.mrb[0].mxu0
    %v543 = vadd.f32 %v148, %v542
    %v544 = vpop.f32.mrb[0].mxu0
    %545 = vmatprep.mubr.bf16.mxu0 0
    %546 = vmatmul.mubr.bf16.gmra.mrb[0].mxu0 %v92
    %v547 = vpop.f32.mrb[0].mxu0
    %v548 = vadd.f32 %v148, %v547
    %v549 = vpop.f32.mrb[0].mxu0
    %v550 = vpop.f32.mrb[0].mxu0
    %v551 = vadd.f32 %v148, %v550
    %v552 = vpop.f32.mrb[0].mxu0
    %553 = vmatprep.mubr.bf16.mxu0 0
    %554 = vmatmul.mubr.bf16.gmra.mrb[0].mxu0 %v93
    %v555 = vpop.f32.mrb[0].mxu0
    %v556 = vadd.f32 %v148, %v555
    %v557 = vpop.f32.mrb[0].mxu0
    %v558 = vpop.f32.mrb[0].mxu0
    %v559 = vadd.f32 %v148, %v558
    %v560 = vpop.f32.mrb[0].mxu0
    %561 = vmatprep.mubr.bf16.mxu0 0
    %562 = vmatmul.mubr.bf16.gmra.mrb[0].mxu0 %v94
    %v563 = vpop.f32.mrb[0].mxu0
    %v564 = vadd.f32 %v148, %v563
    %v565 = vpop.f32.mrb[0].mxu0
    %v566 = vpop.f32.mrb[0].mxu0
    %v567 = vadd.f32 %v148, %v566
    %v568 = vpop.f32.mrb[0].mxu0
    %569 = vmatprep.mubr.bf16.mxu0 0
    %570 = vmatmul.mubr.bf16.gmra.mrb[0].mxu0 %v95
    %v571 = vpop.f32.mrb[0].mxu0
    %v572 = vadd.f32 %v148, %v571
    %v573 = vpop.f32.mrb[0].mxu0
    %v574 = vpop.f32.mrb[0].mxu0
    %v575 = vadd.f32 %v148, %v574
    %v576 = vpop.f32.mrb[0].mxu0
    %577 = vmatprep.mubr.bf16.mxu0 0
    %578 = vmatmul.mubr.bf16.gmra.mrb[0].mxu0 %v96
    %v579 = vpop.f32.mrb[0].mxu0
    %v580 = vadd.f32 %v148, %v579
    %v581 = vpop.f32.mrb[0].mxu0
    %v582 = vpop.f32.mrb[0].mxu0
    %v583 = vadd.f32 %v148, %v582
    %v584 = vpop.f32.mrb[0].mxu0
    %585 = vmatprep.mubr.bf16.mxu0 0
    %586 = vmatmul.mubr.bf16.gmra.mrb[0].mxu0 %v97
    %v587 = vpop.f32.mrb[0].mxu0
    %v588 = vadd.f32 %v148, %v587
    %v589 = vpop.f32.mrb[0].mxu0
    %v590 = vpop.f32.mrb[0].mxu0
    %v591 = vadd.f32 %v148, %v590
    %v592 = vpop.f32.mrb[0].mxu0
    %593 = vmatprep.mubr.bf16.mxu0 0
    %594 = vmatmul.mubr.bf16.gmra.mrb[0].mxu0 %v98
    %v595 = vpop.f32.mrb[0].mxu0
    %v596 = vadd.f32 %v148, %v595
    %v597 = vpop.f32.mrb[0].mxu0
    %v598 = vpop.f32.mrb[0].mxu0
    %v599 = vadd.f32 %v148, %v598
    %v600 = vpop.f32.mrb[0].mxu0
    %601 = vmatprep.mubr.bf16.mxu0 0
    %602 = vmatmul.mubr.bf16.gmra.mrb[0].mxu0 %v99
    %v603 = vpop.f32.mrb[0].mxu0
    %v604 = vadd.f32 %v148, %v603
    %v605 = vpop.f32.mrb[0].mxu0
    %v606 = vpop.f32.mrb[0].mxu0
    %v607 = vadd.f32 %v148, %v606
    %v608 = vpop.f32.mrb[0].mxu0
    %609 = vmatprep.mubr.bf16.mxu0 0
    %610 = vmatmul.mubr.bf16.gmra.mrb[0].mxu0 %v100
    %v611 = vpop.f32.mrb[0].mxu0
    %v612 = vadd.f32 %v148, %v611
    %v613 = vpop.f32.mrb[0].mxu0
    %v614 = vpop.f32.mrb[0].mxu0
    %v615 = vadd.f32 %v148, %v614
    %v616 = vpop.f32.mrb[0].mxu0
    %617 = vmatprep.mubr.bf16.mxu0 0
    %618 = vmatmul.mubr.bf16.gmra.mrb[0].mxu0 %v101
    %v619 = vpop.f32.mrb[0].mxu0
    %v620 = vadd.f32 %v148, %v619
    %v621 = vpop.f32.mrb[0].mxu0
    %v622 = vpop.f32.mrb[0].mxu0
    %v623 = vadd.f32 %v148, %v622
    %v624 = vpop.f32.mrb[0].mxu0
    %625 = vmatprep.mubr.bf16.mxu0 0
    %626 = vmatmul.mubr.bf16.gmra.mrb[0].mxu0 %v102
    %v627 = vpop.f32.mrb[0].mxu0
    %v628 = vadd.f32 %v148, %v627
    %v629 = vpop.f32.mrb[0].mxu0
    %v630 = vpop.f32.mrb[0].mxu0
    %v631 = vadd.f32 %v148, %v630
    %v632 = vpop.f32.mrb[0].mxu0
    %633 = vdwg.mxu0
    %v634 = vpack.c.bf16 %v319, %v315
    %v635 = vpack.c.bf16 %v321, %v317
    %v636 = vpack.c.bf16 %v511, %v508
    %v637 = vpack.c.bf16 %v329, %v325
    %v638 = vpack.c.bf16 %v331, %v327
    %v639 = vpack.c.bf16 %v519, %v516
    %v640 = vpack.c.bf16 %v339, %v335
    %v641 = vpack.c.bf16 %v341, %v337
    %v642 = vpack.c.bf16 %v527, %v524
    %v643 = vpack.c.bf16 %v349, %v345
    %v644 = vpack.c.bf16 %v351, %v347
    %v645 = vpack.c.bf16 %v535, %v532
    %v646 = vpack.c.bf16 %v359, %v355
    %v647 = vpack.c.bf16 %v361, %v357
    %v648 = vpack.c.bf16 %v543, %v540
    %v649 = vpack.c.bf16 %v369, %v365
    %v650 = vpack.c.bf16 %v371, %v367
    %v651 = vpack.c.bf16 %v551, %v548
    %v652 = vpack.c.bf16 %v379, %v375
    %v653 = vpack.c.bf16 %v381, %v377
    %v654 = vpack.c.bf16 %v559, %v556
    %v655 = vpack.c.bf16 %v389, %v385
    %v656 = vpack.c.bf16 %v391, %v387
    %v657 = vpack.c.bf16 %v567, %v564
    %v658 = vpack.c.bf16 %v399, %v395
    %v659 = vpack.c.bf16 %v401, %v397
    %v660 = vpack.c.bf16 %v575, %v572
    %v661 = vpack.c.bf16 %v409, %v405
    %v662 = vpack.c.bf16 %v411, %v407
    %v663 = vpack.c.bf16 %v583, %v580
    %v664 = vpack.c.bf16 %v419, %v415
    %v665 = vpack.c.bf16 %v421, %v417
    %v666 = vpack.c.bf16 %v591, %v588
    %v667 = vpack.c.bf16 %v429, %v425
    %v668 = vpack.c.bf16 %v431, %v427
    %v669 = vpack.c.bf16 %v599, %v596
    %v670 = vpack.c.bf16 %v439, %v435
    %v671 = vpack.c.bf16 %v441, %v437
    %v672 = vpack.c.bf16 %v607, %v604
    %v673 = vpack.c.bf16 %v449, %v445
    %v674 = vpack.c.bf16 %v451, %v447
    %v675 = vpack.c.bf16 %v615, %v612
    %v676 = vpack.c.bf16 %v459, %v455
    %v677 = vpack.c.bf16 %v461, %v457
    %v678 = vpack.c.bf16 %v623, %v620
    %v679 = vpack.c.bf16 %v469, %v465
    %v680 = vpack.c.bf16 %v471, %v467
    %v681 = vpack.c.bf16 %v631, %v628
    %v730 = vunpack.c.l.b16 %v634
    %v731 = vunpack.c.l.b16 %v635
    %v732 = vunpack.c.l.b16 %v636
    %v733 = vunpack.c.h.b16 %v634
    %v734 = vunpack.c.h.b16 %v635
    %v735 = vunpack.c.h.b16 %v636
    %v736 = vunpack.c.l.b16 %v637
    %v737 = vunpack.c.l.b16 %v638
    %v738 = vunpack.c.l.b16 %v639
    %v739 = vunpack.c.h.b16 %v637
    %v740 = vunpack.c.h.b16 %v638
    %v741 = vunpack.c.h.b16 %v639
    %v742 = vunpack.c.l.b16 %v640
    %v743 = vunpack.c.l.b16 %v641
    %v744 = vunpack.c.l.b16 %v642
    %v745 = vunpack.c.h.b16 %v640
    %v746 = vunpack.c.h.b16 %v641
    %v747 = vunpack.c.h.b16 %v642
    %v748 = vunpack.c.l.b16 %v643
    %v749 = vunpack.c.l.b16 %v644
    %v750 = vunpack.c.l.b16 %v645
    %v751 = vunpack.c.h.b16 %v643
    %v752 = vunpack.c.h.b16 %v644
    %v753 = vunpack.c.h.b16 %v645
    %v754 = vunpack.c.l.b16 %v646
    %v755 = vunpack.c.l.b16 %v647
    %v756 = vunpack.c.l.b16 %v648
    %v757 = vunpack.c.h.b16 %v646
    %v758 = vunpack.c.h.b16 %v647
    %v759 = vunpack.c.h.b16 %v648
    %v760 = vunpack.c.l.b16 %v649
    %v761 = vunpack.c.l.b16 %v650
    %v762 = vunpack.c.l.b16 %v651
    %v763 = vunpack.c.h.b16 %v649
    %v764 = vunpack.c.h.b16 %v650
    %v765 = vunpack.c.h.b16 %v651
    %v766 = vunpack.c.l.b16 %v652
    %v767 = vunpack.c.l.b16 %v653
    %v768 = vunpack.c.l.b16 %v654
    %v769 = vunpack.c.h.b16 %v652
    %v770 = vunpack.c.h.b16 %v653
    %v771 = vunpack.c.h.b16 %v654
    %v772 = vunpack.c.l.b16 %v655
    %v773 = vunpack.c.l.b16 %v656
    %v774 = vunpack.c.l.b16 %v657
    %v775 = vunpack.c.h.b16 %v655
    %v776 = vunpack.c.h.b16 %v656
    %v777 = vunpack.c.h.b16 %v657
    %v778 = vunpack.c.l.b16 %v658
    %v779 = vunpack.c.l.b16 %v659
    %v780 = vunpack.c.l.b16 %v660
    %v781 = vunpack.c.h.b16 %v658
    %v782 = vunpack.c.h.b16 %v659
    %v783 = vunpack.c.h.b16 %v660
    %v784 = vunpack.c.l.b16 %v661
    %v785 = vunpack.c.l.b16 %v662
    %v786 = vunpack.c.l.b16 %v663
    %v787 = vunpack.c.h.b16 %v661
    %v788 = vunpack.c.h.b16 %v662
    %v789 = vunpack.c.h.b16 %v663
    %v790 = vunpack.c.l.b16 %v664
    %v791 = vunpack.c.l.b16 %v665
    %v792 = vunpack.c.l.b16 %v666
    %v793 = vunpack.c.h.b16 %v664
    %v794 = vunpack.c.h.b16 %v665
    %v795 = vunpack.c.h.b16 %v666
    %v796 = vunpack.c.l.b16 %v667
    %v797 = vunpack.c.l.b16 %v668
    %v798 = vunpack.c.l.b16 %v669
    %v799 = vunpack.c.h.b16 %v667
    %v800 = vunpack.c.h.b16 %v668
    %v801 = vunpack.c.h.b16 %v669
    %v802 = vunpack.c.l.b16 %v670
    %v803 = vunpack.c.l.b16 %v671
    %v804 = vunpack.c.l.b16 %v672
    %v805 = vunpack.c.h.b16 %v670
    %v806 = vunpack.c.h.b16 %v671
    %v807 = vunpack.c.h.b16 %v672
    %v808 = vunpack.c.l.b16 %v673
    %v809 = vunpack.c.l.b16 %v674
    %v810 = vunpack.c.l.b16 %v675
    %v811 = vunpack.c.h.b16 %v673
    %v812 = vunpack.c.h.b16 %v674
    %v813 = vunpack.c.h.b16 %v675
    %v814 = vunpack.c.l.b16 %v676
    %v815 = vunpack.c.l.b16 %v677
    %v816 = vunpack.c.l.b16 %v678
    %v817 = vunpack.c.h.b16 %v676
    %v818 = vunpack.c.h.b16 %v677
    %v819 = vunpack.c.h.b16 %v678
    %v820 = vunpack.c.l.b16 %v679
    %v821 = vunpack.c.l.b16 %v680
    %v822 = vunpack.c.l.b16 %v681
    %v823 = vunpack.c.h.b16 %v679
    %v824 = vunpack.c.h.b16 %v680
    %v825 = vunpack.c.h.b16 %v681
    %v826 = vpack.c.b16 %v731, %v730
    %v827 = vpack.c.b16 %v732, %v732
    %v828 = vpack.c.b16 %v734, %v733
    %v829 = vpack.c.b16 %v735, %v735
    %v830 = vpack.c.b16 %v737, %v736
    %v831 = vpack.c.b16 %v738, %v738
    %v832 = vpack.c.b16 %v740, %v739
    %v833 = vpack.c.b16 %v741, %v741
    %v834 = vpack.c.b16 %v743, %v742
    %v835 = vpack.c.b16 %v744, %v744
    %v836 = vpack.c.b16 %v746, %v745
    %v837 = vpack.c.b16 %v747, %v747
    %v838 = vpack.c.b16 %v749, %v748
    %v839 = vpack.c.b16 %v750, %v750
    %v840 = vpack.c.b16 %v752, %v751
    %v841 = vpack.c.b16 %v753, %v753
    %v842 = vpack.c.b16 %v755, %v754
    %v843 = vpack.c.b16 %v756, %v756
    %v844 = vpack.c.b16 %v758, %v757
    %v845 = vpack.c.b16 %v759, %v759
    %v846 = vpack.c.b16 %v761, %v760
    %v847 = vpack.c.b16 %v762, %v762
    %v848 = vpack.c.b16 %v764, %v763
    %v849 = vpack.c.b16 %v765, %v765
    %v850 = vpack.c.b16 %v767, %v766
    %v851 = vpack.c.b16 %v768, %v768
    %v852 = vpack.c.b16 %v770, %v769
    %v853 = vpack.c.b16 %v771, %v771
    %v854 = vpack.c.b16 %v773, %v772
    %v855 = vpack.c.b16 %v774, %v774
    %v856 = vpack.c.b16 %v776, %v775
    %v857 = vpack.c.b16 %v777, %v777
    %v858 = vpack.c.b16 %v779, %v778
    %v859 = vpack.c.b16 %v780, %v780
    %v860 = vpack.c.b16 %v782, %v781
    %v861 = vpack.c.b16 %v783, %v783
    %v862 = vpack.c.b16 %v785, %v784
    %v863 = vpack.c.b16 %v786, %v786
    %v864 = vpack.c.b16 %v788, %v787
    %v865 = vpack.c.b16 %v789, %v789
    %v866 = vpack.c.b16 %v791, %v790
    %v867 = vpack.c.b16 %v792, %v792
    %v868 = vpack.c.b16 %v794, %v793
    %v869 = vpack.c.b16 %v795, %v795
    %v870 = vpack.c.b16 %v797, %v796
    %v871 = vpack.c.b16 %v798, %v798
    %v872 = vpack.c.b16 %v800, %v799
    %v873 = vpack.c.b16 %v801, %v801
    %v874 = vpack.c.b16 %v803, %v802
    %v875 = vpack.c.b16 %v804, %v804
    %v876 = vpack.c.b16 %v806, %v805
    %v877 = vpack.c.b16 %v807, %v807
    %v878 = vpack.c.b16 %v809, %v808
    %v879 = vpack.c.b16 %v810, %v810
    %v880 = vpack.c.b16 %v812, %v811
    %v881 = vpack.c.b16 %v813, %v813
    %v882 = vpack.c.b16 %v815, %v814
    %v883 = vpack.c.b16 %v816, %v816
    %v884 = vpack.c.b16 %v818, %v817
    %v885 = vpack.c.b16 %v819, %v819
    %v886 = vpack.c.b16 %v821, %v820
    %v887 = vpack.c.b16 %v822, %v822
    %v888 = vpack.c.b16 %v824, %v823
    %v889 = vpack.c.b16 %v825, %v825
    %954 = vst [vmem:[#allocation8] sm:$0xff] %v826
    %955 = vst [vmem:[#allocation8 + $0x8] sm:$0xf] %v827
    %956 = vst [vmem:[#allocation8 + $0xc] sm:$0xff] %v828
    %957 = vst [vmem:[#allocation8 + $0x14] sm:$0xf] %v829
    %958 = vst [vmem:[#allocation8 + $0x18] sm:$0xff] %v830
    %959 = vst [vmem:[#allocation8 + $0x20] sm:$0xf] %v831
    %960 = vst [vmem:[#allocation8 + $0x24] sm:$0xff] %v832
    %961 = vst [vmem:[#allocation8 + $0x2c] sm:$0xf] %v833
    %962 = vst [vmem:[#allocation8 + $0x30] sm:$0xff] %v834
    %963 = vst [vmem:[#allocation8 + $0x38] sm:$0xf] %v835
    %964 = vst [vmem:[#allocation8 + $0x3c] sm:$0xff] %v836
    %965 = vst [vmem:[#allocation8 + $0x44] sm:$0xf] %v837
    %966 = vst [vmem:[#allocation8 + $0x48] sm:$0xff] %v838
    %967 = vst [vmem:[#allocation8 + $0x50] sm:$0xf] %v839
    %968 = vst [vmem:[#allocation8 + $0x54] sm:$0xff] %v840
    %969 = vst [vmem:[#allocation8 + $0x5c] sm:$0xf] %v841
    %970 = vst [vmem:[#allocation8 + $0x60] sm:$0xff] %v842
    %971 = vst [vmem:[#allocation8 + $0x68] sm:$0xf] %v843
    %972 = vst [vmem:[#allocation8 + $0x6c] sm:$0xff] %v844
    %973 = vst [vmem:[#allocation8 + $0x74] sm:$0xf] %v845
    %974 = vst [vmem:[#allocation8 + $0x78] sm:$0xff] %v846
    %975 = vst [vmem:[#allocation8 + $0x80] sm:$0xf] %v847
    %976 = vst [vmem:[#allocation8 + $0x84] sm:$0xff] %v848
    %977 = vst [vmem:[#allocation8 + $0x8c] sm:$0xf] %v849
    %978 = vst [vmem:[#allocation8 + $0x90] sm:$0xff] %v850
    %979 = vst [vmem:[#allocation8 + $0x98] sm:$0xf] %v851
    %980 = vst [vmem:[#allocation8 + $0x9c] sm:$0xff] %v852
    %981 = vst [vmem:[#allocation8 + $0xa4] sm:$0xf] %v853
    %982 = vst [vmem:[#allocation8 + $0xa8] sm:$0xff] %v854
    %983 = vst [vmem:[#allocation8 + $0xb0] sm:$0xf] %v855
    %984 = vst [vmem:[#allocation8 + $0xb4] sm:$0xff] %v856
    %985 = vst [vmem:[#allocation8 + $0xbc] sm:$0xf] %v857
    %986 = vst [vmem:[#allocation8 + $0xc0] sm:$0xff] %v858
    %987 = vst [vmem:[#allocation8 + $0xc8] sm:$0xf] %v859
    %988 = vst [vmem:[#allocation8 + $0xcc] sm:$0xff] %v860
    %989 = vst [vmem:[#allocation8 + $0xd4] sm:$0xf] %v861
    %990 = vst [vmem:[#allocation8 + $0xd8] sm:$0xff] %v862
    %991 = vst [vmem:[#allocation8 + $0xe0] sm:$0xf] %v863
    %992 = vst [vmem:[#allocation8 + $0xe4] sm:$0xff] %v864
    %993 = vst [vmem:[#allocation8 + $0xec] sm:$0xf] %v865
    %994 = vst [vmem:[#allocation8 + $0xf0] sm:$0xff] %v866
    %995 = vst [vmem:[#allocation8 + $0xf8] sm:$0xf] %v867
    %996 = vst [vmem:[#allocation8 + $0xfc] sm:$0xff] %v868
    %997 = vst [vmem:[#allocation8 + $0x104] sm:$0xf] %v869
    %998 = vst [vmem:[#allocation8 + $0x108] sm:$0xff] %v870
    %999 = vst [vmem:[#allocation8 + $0x110] sm:$0xf] %v871
    %1000 = vst [vmem:[#allocation8 + $0x114] sm:$0xff] %v872
    %1001 = vst [vmem:[#allocation8 + $0x11c] sm:$0xf] %v873
    %1002 = vst [vmem:[#allocation8 + $0x120] sm:$0xff] %v874
    %1003 = vst [vmem:[#allocation8 + $0x128] sm:$0xf] %v875
    %1004 = vst [vmem:[#allocation8 + $0x12c] sm:$0xff] %v876
    %1005 = vst [vmem:[#allocation8 + $0x134] sm:$0xf] %v877
    %1006 = vst [vmem:[#allocation8 + $0x138] sm:$0xff] %v878
    %1007 = vst [vmem:[#allocation8 + $0x140] sm:$0xf] %v879
    %1008 = vst [vmem:[#allocation8 + $0x144] sm:$0xff] %v880
    %1009 = vst [vmem:[#allocation8 + $0x14c] sm:$0xf] %v881
    %1010 = vst [vmem:[#allocation8 + $0x150] sm:$0xff] %v882
    %1011 = vst [vmem:[#allocation8 + $0x158] sm:$0xf] %v883
    %1012 = vst [vmem:[#allocation8 + $0x15c] sm:$0xff] %v884
    %1013 = vst [vmem:[#allocation8 + $0x164] sm:$0xf] %v885
    %1014 = vst [vmem:[#allocation8 + $0x168] sm:$0xff] %v886
    %1015 = vst [vmem:[#allocation8 + $0x170] sm:$0xf] %v887
    %1016 = vst [vmem:[#allocation8 + $0x174] sm:$0xff] %v888
    %1017 = vst [vmem:[#allocation8 + $0x17c] sm:$0xf] %v889
    // Predicated region
    $region26: #{tpu_custom_call.1} parent=1 // pred_check
      _
    $region27: #{tpu_custom_call.1} parent=1 // pred_check_branch
      %1019 = sbr.rel (0) target = $region29
    $region28: #{tpu_custom_call.1} parent=1 // pred_region
      %s1021 = ssub.s32 6144, 6144
      %1022 = vsyncadd [#allocation4], %s1021
      %s1023 = sshll.u32 [#allocation8], 4
      %s1024 = int_to_ptr.vmem [resolvable:$true] %s1023
      %1029 = dma.vmem_to_hbm [thread:$0]  %s1024, 6144, %s3, [#allocation4], 192, 192, 12
    $region29: #{tpu_custom_call.1} parent=1 // pred_fallthru
      _
    // Predicated region
    $region30: #{tpu_custom_call.1} parent=1 // pred_check
      _
    $region31: #{tpu_custom_call.1} parent=1 // pred_check_branch
      %1031 = sbr.rel (0) target = $region33
    $region32: #{tpu_custom_call.1} parent=1 // pred_region
      %1032 = dma.done [#allocation4], 6144
    $region33: #{tpu_custom_call.1} parent=1 // pred_fallthru
      _
    %1033 = vsyncpa [#allocation3], 1
    %1034 = vsyncpa [#allocation6], 1
    %1035 = vsyncpa [#allocation4], 1

</llo_original>
